<compile_context>
chip_gen: v5e
topology: v5e:2x2
jax: 0.10.0
libtpu: 0.0.40
codegen_flags: <defaults>
</compile_context>

<pallas_src>
import functools

import jax
import jax.numpy as jnp
from jax.experimental import pallas as pl
from jax.experimental.pallas import tpu as pltpu

LANE = 128
# 1024 x 128 f32 = 512 KiB per input block -> 2 inputs x 2 pipeline buffers
# + 512 KiB accumulator ~= 2.5 MiB VMEM: safe on v5e/v6e (128 MiB) and v7x (64 MiB).
MAX_ROW_TILE = 1024


def _wmse_kernel(pred_ref, tgt_ref, out_ref, acc_ref, *, alpha, beta, inv_n):
    i = pl.program_id(0)

    @pl.when(i == 0)
    def _():
        acc_ref[...] = jnp.zeros_like(acc_ref)

    p = pred_ref[...]
    t = tgt_ref[...]
    diff = p - t
    weight = 1.0 + alpha * jnp.abs(t) + beta * (t * t)
    # Vector-resident accumulation: cheap per-step VALU add; the expensive XLU
    # reduction and SMEM scalar store are paid exactly once, in the finalizer.
    acc_ref[...] += weight * (diff * diff)

    @pl.when(i == pl.num_programs(0) - 1)
    def _():
        out_ref[0, 0] = jnp.sum(acc_ref[...]) * jnp.float32(inv_n)


def weighted_mse_loss(pred, target, alpha=1.0, beta=1.0):
    assert pred.shape == target.shape
    n_elems = pred.size

    flat_p = jnp.ravel(pred).astype(jnp.float32)
    flat_t = jnp.ravel(target).astype(jnp.float32)

    # Rows of 128 lanes, rounded up to a multiple of 8 (f32 sublane tile).
    rows = -(-n_elems // LANE)
    rows = -(-rows // 8) * 8
    if rows <= MAX_ROW_TILE:
        row_tile = rows            # single block: grid=(1,), no tiling overhead
    else:
        row_tile = MAX_ROW_TILE
        rows = -(-rows // row_tile) * row_tile

    pad = rows * LANE - n_elems
    if pad:
        # Only hit off the happy path (the demo's 2048 elements need no pad).
        # Zero padding contributes 0 to the weighted sum.
        flat_p = jnp.pad(flat_p, (0, pad))
        flat_t = jnp.pad(flat_t, (0, pad))

    p2d = flat_p.reshape(rows, LANE)
    t2d = flat_t.reshape(rows, LANE)

    kernel = functools.partial(
        _wmse_kernel,
        alpha=float(alpha),
        beta=float(beta),
        inv_n=1.0 / float(n_elems),
    )

    # NOTE: for very large inputs on v7x one could add a leading size-2
    # "parallel" grid axis to shard the reduction across both TensorCores;
    # omitted here since the single-core path already saturates HBM BW with
    # these tile sizes and is portable across v5e/v6e/v7x.
    out = pl.pallas_call(
        kernel,
        out_shape=jax.ShapeDtypeStruct((1, 1), jnp.float32),
        grid=(rows // row_tile,),
        in_specs=[
            pl.BlockSpec((row_tile, LANE), lambda i: (i, 0)),
            pl.BlockSpec((row_tile, LANE), lambda i: (i, 0)),
        ],
        out_specs=pl.BlockSpec((1, 1), lambda i: (0, 0), memory_space=pltpu.SMEM),
        scratch_shapes=[pltpu.VMEM((row_tile, LANE), jnp.float32)],
        compiler_params=pltpu.CompilerParams(
            dimension_semantics=("arbitrary",),  # reduction axis
            vmem_limit_bytes=32 * 1024 * 1024,
        ),
    )(p2d, t2d)
    return out[0, 0]


def _reference(pred, target, alpha=1.0, beta=1.0):
    loss = (pred - target) ** 2
    weight = 1.0 + alpha * jnp.abs(target) + beta * target**2
    return jnp.mean(weight * loss)


if __name__ == "__main__":
    key = jax.random.PRNGKey(0)
    k1, k2 = jax.random.split(key)
    # Shapes consistent with an NCHW prediction/target pair.
    pred = jax.random.normal(k1, (2, 4, 16, 16), dtype=jnp.float32)
    target = jax.random.normal(k2, (2, 4, 16, 16), dtype=jnp.float32)

    out = weighted_mse_loss(pred, target, alpha=1.0, beta=1.0)
    out = jax.block_until_ready(out)

    ref = _reference(pred, target, alpha=1.0, beta=1.0)
    assert jnp.allclose(out, ref, rtol=1e-5, atol=1e-5), (out, ref)
    print("KERNEL_OK")
</pallas_src>

<mosaic_0001>
module attributes {stable_mosaic.version = 11 : i64} {
  func.func @_wmse_kernel(%arg0: i32, %arg1: memref<16x128xf32, #tpu.memory_space<vmem>>, %arg2: memref<16x128xf32, #tpu.memory_space<vmem>>, %arg3: memref<1x1xf32, #tpu.memory_space<smem>>, %arg4: memref<16x128xf32, #tpu.memory_space<vmem>>) attributes {dimension_semantics = [#tpu.dimension_semantics<arbitrary>], iteration_bounds = array<i64: 1>, scalar_prefetch = 0 : i64, scratch_operands = 1 : i64, tpu.core_type = #tpu.core_type<tc>, window_params = [{transform_indices = @transform_0, window_bounds = array<i64: 16, 128>}, {transform_indices = @transform_1, window_bounds = array<i64: 16, 128>}, {transform_indices = @transform_2, window_bounds = array<i64: 1, 1>}]} {
    %c0_i32 = arith.constant 0 : i32
    %0 = arith.cmpi eq, %arg0, %c0_i32 : i32
    %1 = arith.extui %0 : i1 to i32
    %c0_i32_0 = arith.constant 0 : i32
    %2 = arith.cmpi ne, %1, %c0_i32_0 : i32
    scf.if %2 {
      %cst_12 = arith.constant 0.000000e+00 : f32
      %23 = vector.broadcast %cst_12 : f32 to vector<16x128xf32>
      %c0_13 = arith.constant 0 : index
      %c0_14 = arith.constant 0 : index
      %24 = vector.load %arg4[%c0_13, %c0_14] : memref<16x128xf32, #tpu.memory_space<vmem>>, vector<16x128xf32>
      tpu.vector_store %arg4[%c0_13, %c0_14], %23 {strides = array<i32>} : memref<16x128xf32, #tpu.memory_space<vmem>>, vector<16x128xf32>,
    } else {
    }
    %c0 = arith.constant 0 : index
    %c0_1 = arith.constant 0 : index
    %3 = vector.load %arg1[%c0, %c0_1] : memref<16x128xf32, #tpu.memory_space<vmem>>, vector<16x128xf32>
    %c0_2 = arith.constant 0 : index
    %c0_3 = arith.constant 0 : index
    %4 = vector.load %arg2[%c0_2, %c0_3] : memref<16x128xf32, #tpu.memory_space<vmem>>, vector<16x128xf32>
    %5 = arith.subf %3, %4 : vector<16x128xf32>
    %6 = math.absf %4 : vector<16x128xf32>
    %cst = arith.constant 1.000000e+00 : f32
    %7 = vector.broadcast %cst : f32 to vector<16x128xf32>
    %8 = arith.mulf %7, %6 : vector<16x128xf32>
    %cst_4 = arith.constant 1.000000e+00 : f32
    %9 = vector.broadcast %cst_4 : f32 to vector<16x128xf32>
    %10 = arith.addf %9, %8 : vector<16x128xf32>
    %11 = arith.mulf %4, %4 : vector<16x128xf32>
    %cst_5 = arith.constant 1.000000e+00 : f32
    %12 = vector.broadcast %cst_5 : f32 to vector<16x128xf32>
    %13 = arith.mulf %12, %11 : vector<16x128xf32>
    %14 = arith.addf %10, %13 : vector<16x128xf32>
    %c0_6 = arith.constant 0 : index
    %c0_7 = arith.constant 0 : index
    %15 = vector.load %arg4[%c0_6, %c0_7] : memref<16x128xf32, #tpu.memory_space<vmem>>, vector<16x128xf32>
    %16 = arith.mulf %5, %5 : vector<16x128xf32>
    %17 = arith.mulf %14, %16 : vector<16x128xf32>
    %18 = arith.addf %15, %17 : vector<16x128xf32>
    %c0_8 = arith.constant 0 : index
    %c0_9 = arith.constant 0 : index
    %19 = vector.load %arg4[%c0_8, %c0_9] : memref<16x128xf32, #tpu.memory_space<vmem>>, vector<16x128xf32>
    tpu.vector_store %arg4[%c0_8, %c0_9], %18 {strides = array<i32>} : memref<16x128xf32, #tpu.memory_space<vmem>>, vector<16x128xf32>,
    %c0_i32_10 = arith.constant 0 : i32
    %20 = arith.cmpi eq, %arg0, %c0_i32_10 : i32
    %21 = arith.extui %20 : i1 to i32
    %c0_i32_11 = arith.constant 0 : i32
    %22 = arith.cmpi ne, %21, %c0_i32_11 : i32
    scf.if %22 {
      %c0_12 = arith.constant 0 : index
      %c0_13 = arith.constant 0 : index
      %23 = vector.load %arg4[%c0_12, %c0_13] : memref<16x128xf32, #tpu.memory_space<vmem>>, vector<16x128xf32>
      %24 = vector.shape_cast %23 : vector<16x128xf32> to vector<1x16x128xf32>
      %cst_14 = arith.constant dense<0.000000e+00> : vector<1xf32>
      %25 = vector.multi_reduction <add>, %24, %cst_14 [1, 2] : vector<1x16x128xf32> to vector<1xf32>
      %26 = vector.shape_cast %25 : vector<1xf32> to vector<1x1x1xf32>
      %27 = vector.extract %26[0, 0, 0] : f32 from vector<1x1x1xf32>
      %cst_15 = arith.constant 4.8828125E-4 : f32
      %28 = arith.mulf %27, %cst_15 : f32
      %c0_16 = arith.constant 0 : index
      %c0_17 = arith.constant 0 : index
      %29 = memref.load %arg3[%c0_16, %c0_17] : memref<1x1xf32, #tpu.memory_space<smem>>
      memref.store %28, %arg3[%c0_16, %c0_17] : memref<1x1xf32, #tpu.memory_space<smem>>
    } else {
    }
    return
  }
  func.func @transform_0(%arg0: i32) -> (i32, i32) {
    %c0_i32 = arith.constant 0 : i32
    %c0_i32_0 = arith.constant 0 : i32
    return %arg0, %c0_i32 : i32, i32
  }
  func.func @transform_1(%arg0: i32) -> (i32, i32) {
    %c0_i32 = arith.constant 0 : i32
    %c0_i32_0 = arith.constant 0 : i32
    return %arg0, %c0_i32 : i32, i32
  }
  func.func @transform_2(%arg0: i32) -> (i32, i32) {
    %c0_i32 = arith.constant 0 : i32
    %c0_i32_0 = arith.constant 0 : i32
    %c0_i32_1 = arith.constant 0 : i32
    return %c0_i32, %c0_i32_0 : i32, i32
  }
}

</mosaic_0001>

<llo_original>
// kernel: tpu_custom_call.1
$region0: #{tpu_custom_call.1}
  #allocation0 [shape = 'u32[]', space=smem, size = 0x4, offset = 0x4, fixed_abs, tag = 'smem constant byte address 0x4 - core index']
  #allocation1 [shape = 'u32[72,128]{1,0:T(1,128)}', space=vmem, size = 0x9000, scoped, tag = 'internal scratch']
  #allocation2 [shape = 'f32[16,128]{1,0:T(8,128)}', space=vmem, size = 0x2000, scoped, tag = 'scratch operand']
  %s0 = inlined_call_operand.hbm [shape: f32[16,128], index: 0, kind: input, shape index: {}]
  %s1 = inlined_call_operand.hbm [shape: f32[16,128], index: 1, kind: input, shape index: {}]
  %s2 = inlined_call_operand.hbm [shape: f32[1,1], index: 2, kind: output, shape index: {}]
  %s3 = sld [smem:[#allocation0]]
  $region34: #{tpu_custom_call.1} parent=0
    _
  %s5 = ssub.s32 1, %s3
  %s6 = scalar_select 0, %s5, %s3
  $region1: #{tpu_custom_call.1} parent=0
    #allocation3 [shape = 'u8[8192]{0}', space=vmem, size = 0x2000, scoped, tag = 'input window, operand 0, single buffered']
    #allocation4 [shape = 's32[1]{0}', space=sflag, size = 0x4, scoped, tag = 'scoped memory for tpu_custom_call.1']
    #allocation5 [shape = 's32[1]{0}', space=sflag, size = 0x4, scoped, tag = 'scoped memory for tpu_custom_call.1']
    #allocation6 [shape = 'u8[8192]{0}', space=vmem, size = 0x2000, scoped, tag = 'input window, operand 1, single buffered']
    #allocation7 [shape = 's32[1]{0}', space=sflag, size = 0x4, scoped, tag = 'scoped memory for tpu_custom_call.1']
    #allocation8 [shape = 'u8[512]{0}', space=smem, size = 0x200, scoped, tag = 'output window, operand 0, single buffered']
    %7 = vsyncpa [#allocation4], 0
    %8 = vsyncpa [#allocation7], 0
    %9 = vsyncpa [#allocation5], 0
    // Predicated region
    $region2: #{tpu_custom_call.1} parent=1 // pred_check
      _
    $region3: #{tpu_custom_call.1} parent=1 // pred_check_branch
      %11 = sbr.rel (0) target = $region5
    $region4: #{tpu_custom_call.1} parent=1 // pred_region
      %13 = vsyncadd [#allocation4], 0
      %s14 = sshll.u32 %s0, 4
      %s15 = int_to_ptr.hbm [resolvable:$true] %s14
      %s16 = sshll.u32 [#allocation3], 4
      %s17 = int_to_ptr.vmem [resolvable:$true] %s16
      %22 = dma.hbm_to_vmem [thread:$0]  %s15, 256, %s17, [#allocation4], 128, 128, 8
    $region5: #{tpu_custom_call.1} parent=1 // pred_fallthru
      _
    // Predicated region
    $region6: #{tpu_custom_call.1} parent=1 // pred_check
      _
    $region7: #{tpu_custom_call.1} parent=1 // pred_check_branch
      %24 = sbr.rel (0) target = $region9
    $region8: #{tpu_custom_call.1} parent=1 // pred_region
      %26 = vsyncadd [#allocation7], 0
      %s27 = sshll.u32 %s1, 4
      %s28 = int_to_ptr.hbm [resolvable:$true] %s27
      %s29 = sshll.u32 [#allocation6], 4
      %s30 = int_to_ptr.vmem [resolvable:$true] %s29
      %35 = dma.hbm_to_vmem [thread:$0]  %s28, 256, %s30, [#allocation7], 128, 128, 8
    $region9: #{tpu_custom_call.1} parent=1 // pred_fallthru
      _
    // Predicated region
    $region10: #{tpu_custom_call.1} parent=1 // pred_check
      _
    $region11: #{tpu_custom_call.1} parent=1 // pred_check_branch
      %37 = sbr.rel (0) target = $region13
    $region12: #{tpu_custom_call.1} parent=1 // pred_region
      %39 = dma.done [#allocation4], 256
    $region13: #{tpu_custom_call.1} parent=1 // pred_fallthru
      _
    // Predicated region
    $region14: #{tpu_custom_call.1} parent=1 // pred_check
      _
    $region15: #{tpu_custom_call.1} parent=1 // pred_check_branch
      %41 = sbr.rel (0) target = $region17
    $region16: #{tpu_custom_call.1} parent=1 // pred_region
      %43 = dma.done [#allocation7], 256
    $region17: #{tpu_custom_call.1} parent=1 // pred_fallthru
      _
    %p44 = scmp.eq.s32.totalorder 0, 0
    // Predicated region
    $region18: #{tpu_custom_call.1} parent=1 // pred_check
      %p45 = pneg %p44
    $region19: #{tpu_custom_call.1} parent=1 // pred_check_branch
      %47 = sbr.rel (%p45) target = $region21
    $region20: #{tpu_custom_call.1} parent=1 // pred_region
      %48 = vst [vmem:[#allocation2] sm:$0xff] 0.0
      %49 = vst [vmem:[#allocation2 + $0x8] sm:$0xff] 0.0
    $region21: #{tpu_custom_call.1} parent=1 // pred_fallthru
      _
    %v50 = vld [vmem:[#allocation3] sm:$0xff]
    %v51 = vld [vmem:[#allocation3 + $0x8] sm:$0xff]
    %v52 = vld [vmem:[#allocation6] sm:$0xff]
    %v53 = vld [vmem:[#allocation6 + $0x8] sm:$0xff]
    %v54 = vsub.f32 %v50, %v52
    %v55 = vsub.f32 %v51, %v53
    %v56 = vand.u32 2147483647, %v52
    %v57 = vand.u32 2147483647, %v53
    %v58 = vadd.f32 %v56, 1.0
    %v59 = vadd.f32 %v57, 1.0
    %v60 = vmul.f32 %v52, %v52
    %v61 = vmul.f32 %v53, %v53
    %v62 = vadd.f32 %v58, %v60
    %v63 = vadd.f32 %v59, %v61
    %v64 = vld [vmem:[#allocation2] sm:$0xff]
    %v65 = vld [vmem:[#allocation2 + $0x8] sm:$0xff]
    %v66 = vmul.f32 %v54, %v54
    %v67 = vmul.f32 %v55, %v55
    %v68 = vmul.f32 %v62, %v66
    %v69 = vmul.f32 %v63, %v67
    %v70 = vadd.f32 %v64, %v68
    %v71 = vadd.f32 %v65, %v69
    %72 = vst [vmem:[#allocation2] sm:$0xff] %v70
    %73 = vst [vmem:[#allocation2 + $0x8] sm:$0xff] %v71
    // Predicated region
    $region22: #{tpu_custom_call.1} parent=1 // pred_check
      %p74 = pneg %p44
    $region23: #{tpu_custom_call.1} parent=1 // pred_check_branch
      %76 = sbr.rel (%p74) target = $region25
    $region24: #{tpu_custom_call.1} parent=1 // pred_region
      %v77 = vld [vmem:[#allocation2] sm:$0xff]
      %v78 = vld [vmem:[#allocation2 + $0x8] sm:$0xff]
      %v79 = vadd.f32 %v77, %v78
      %80 = vadd.xlane.f32.xlu0 %v79
      %v81 = vpop.xlane.xlu0 %80
      %v82 = vrot.slane %v81, 4
      %v83 = vadd.f32 %v81, %v82
      %v84 = vrot.slane %v83, 2
      %v85 = vadd.f32 %v83, %v84
      %v86 = vrot.slane %v85, 1
      %v87 = vadd.f32 %v85, %v86
      %s88 = vtos %v87
      %s89 = smul.f32 %s88, 0.00048828125
      %s90 = scalar_lea.smem [#allocation8], 0
      %91 = sst [smem:[%s90]] %s89
    $region25: #{tpu_custom_call.1} parent=1 // pred_fallthru
      _
    // Predicated region
    $region26: #{tpu_custom_call.1} parent=1 // pred_check
      _
    $region27: #{tpu_custom_call.1} parent=1 // pred_check_branch
      %93 = sbr.rel (0) target = $region29
    $region28: #{tpu_custom_call.1} parent=1 // pred_region
      %95 = vsyncadd [#allocation5], 0
      %s97 = sshll.u32 %s2, 4
      %s98 = int_to_ptr.hbm [resolvable:$true] %s97
      %100 = dma.smem_to_hbm [#allocation8], 16, %s98, [#allocation5]
    $region29: #{tpu_custom_call.1} parent=1 // pred_fallthru
      _
    // Predicated region
    $region30: #{tpu_custom_call.1} parent=1 // pred_check
      _
    $region31: #{tpu_custom_call.1} parent=1 // pred_check_branch
      %102 = sbr.rel (0) target = $region33
    $region32: #{tpu_custom_call.1} parent=1 // pred_region
      %104 = dma.done [#allocation5], 16
    $region33: #{tpu_custom_call.1} parent=1 // pred_fallthru
      _
    %105 = sfence
    %106 = vsyncpa [#allocation4], 1
    %107 = vsyncpa [#allocation7], 1
    %108 = vsyncpa [#allocation5], 1

</llo_original>
